<compile_context>
chip_gen: v6e
topology: v6e:2x2x1
jax: 0.10.0
libtpu: 0.0.40
codegen_flags: <defaults>
</compile_context>

<pallas_src>
import jax
import jax.numpy as jnp
from jax.experimental import pallas as pl
from jax.experimental.pallas import tpu as pltpu


def _leaky_relu(x, slope=0.01):
    return jnp.where(x > 0, x, slope * x)


def _mlp_kernel(x_ref, w1_ref, b1_ref, w2_ref, b2_ref, w3_ref, b3_ref, o_ref):
    # x_ref: (BM, HW) float32 tile — pooled inside the kernel.
    x = x_ref[...]
    pooled = jnp.mean(x, axis=-1, keepdims=True)           # (BM, 1) == AdaptiveAvgPool2d(1)

    # Linear(in_f=1 -> hidden) + LeakyReLU.
    # K=1 matmul is a degenerate outer product -> do it as a VPU broadcast-FMA.
    h1 = pooled * w1_ref[...] + b1_ref[...]                 # (BM,1)*(1,H) + (1,H)
    h1 = _leaky_relu(h1)

    # Linear(hidden -> hidden) + LeakyReLU (MXU).
    h2 = jnp.dot(h1, w2_ref[...], preferred_element_type=jnp.float32) + b2_ref[...]
    h2 = _leaky_relu(h2)

    # Linear(hidden -> out_f) (MXU).
    out = jnp.dot(h2, w3_ref[...], preferred_element_type=jnp.float32) + b3_ref[...]
    o_ref[...] = out.astype(o_ref.dtype)


def _choose_bm(M, HW, target_bytes=4 * 1024 * 1024, cap=1024):
    """Pick a row-tile size: big enough to amortize per-step overhead, small
    enough that 2x double-buffered tiles stay well under scoped VMEM on all
    generations (v5e 16 MiB default / v7x 64 MiB physical)."""
    bytes_per_row = HW * 4
    bm = max(8, min(cap, target_bytes // max(bytes_per_row, 1)))
    if bm >= M:
        return M                       # full extent — always a legal block shape
    return max(8, (bm // 8) * 8)       # sublane-aligned partial tile


def mlp_forward(x, params):
    """x: (N, C, H, W) float32. Returns (N, C, 1, out_f), matching PyTorch MLP.forward."""
    N, C, H, W = x.shape
    M = N * C
    HW = H * W
    x2d = x.reshape(M, HW)

    w1, b1, w2, b2, w3, b3 = params
    hidden = w1.shape[1]
    out_f = w3.shape[1]

    BM = _choose_bm(M, HW)
    grid = (pl.cdiv(M, BM),)

    # Weights/biases: full blocks, constant index_map -> VMEM-resident across steps.
    const = lambda shape: pl.BlockSpec(shape, lambda i: tuple(0 for _ in shape))

    out = pl.pallas_call(
        _mlp_kernel,
        out_shape=jax.ShapeDtypeStruct((M, out_f), jnp.float32),
        grid=grid,
        in_specs=[
            pl.BlockSpec((BM, HW), lambda i: (i, 0)),   # x tile: pipelined over M
            const((1, hidden)),
            const((1, hidden)),
            const((hidden, hidden)),
            const((1, hidden)),
            const((hidden, out_f)),
            const((1, out_f)),
        ],
        out_specs=pl.BlockSpec((BM, out_f), lambda i: (i, 0)),
        compiler_params=pltpu.CompilerParams(
            dimension_semantics=("parallel",),           # shards tiles across TCs on v7x
        ),
    )(x2d, w1, b1, w2, b2, w3, b3)

    return out.reshape(N, C, 1, out_f)


def init_params(key, in_f, hidden_dim, out_f):
    """Deterministic init mirroring nn.Linear shapes (stored as (in, out) for row-vector matmul)."""
    ks = jax.random.split(key, 6)

    def uniform(k, shape, fan_in):
        bound = 1.0 / (fan_in ** 0.5)
        return jax.random.uniform(k, shape, jnp.float32, -bound, bound)

    w1 = uniform(ks[0], (in_f, hidden_dim), in_f)
    b1 = uniform(ks[1], (1, hidden_dim), in_f)
    w2 = uniform(ks[2], (hidden_dim, hidden_dim), hidden_dim)
    b2 = uniform(ks[3], (1, hidden_dim), hidden_dim)
    w3 = uniform(ks[4], (hidden_dim, out_f), hidden_dim)
    b3 = uniform(ks[5], (1, out_f), hidden_dim)
    return (w1, b1, w2, b2, w3, b3)


if __name__ == "__main__":
    key = jax.random.PRNGKey(0)
    k_x, k_p = jax.random.split(key)

    # Forward semantics force in_f == 1 (pooled last dim is 1 before the Linear stack).
    in_f, hidden_dim, out_f = 1, 32, 8
    N, C, H, W = 2, 4, 16, 16

    x = jax.random.normal(k_x, (N, C, H, W), dtype=jnp.float32)
    params = init_params(k_p, in_f, hidden_dim, out_f)

    y = mlp_forward(x, params)
    jax.block_until_ready(y)

    # Pure-JAX reference check (same math, outside Pallas).
    w1, b1, w2, b2, w3, b3 = params
    pooled = jnp.mean(x, axis=(2, 3)).reshape(N * C, 1)
    h = jnp.where(pooled @ w1 + b1 > 0, pooled @ w1 + b1, 0.01 * (pooled @ w1 + b1))
    h = jnp.where(h @ w2 + b2 > 0, h @ w2 + b2, 0.01 * (h @ w2 + b2))
    ref = (h @ w3 + b3).reshape(N, C, 1, out_f)
    assert jnp.allclose(y, ref, atol=1e-5, rtol=1e-5), "mismatch vs reference"

    assert y.shape == (N, C, 1, out_f)
    print("KERNEL_OK")
</pallas_src>

<mosaic_0001>
module attributes {stable_mosaic.version = 11 : i64} {
  func.func @_mlp_kernel(%arg0: i32, %arg1: memref<8x256xf32, #tpu.memory_space<vmem>>, %arg2: memref<1x32xf32, #tpu.memory_space<vmem>>, %arg3: memref<1x32xf32, #tpu.memory_space<vmem>>, %arg4: memref<32x32xf32, #tpu.memory_space<vmem>>, %arg5: memref<1x32xf32, #tpu.memory_space<vmem>>, %arg6: memref<32x8xf32, #tpu.memory_space<vmem>>, %arg7: memref<1x8xf32, #tpu.memory_space<vmem>>, %arg8: memref<8x8xf32, #tpu.memory_space<vmem>>) attributes {dimension_semantics = [#tpu.dimension_semantics<parallel>], iteration_bounds = array<i64: 1>, scalar_prefetch = 0 : i64, scratch_operands = 0 : i64, tpu.core_type = #tpu.core_type<tc>, window_params = [{transform_indices = @transform_0, window_bounds = array<i64: 8, 256>}, {pipeline_mode = #tpu.pipeline_mode<synchronous>, transform_indices = @transform_1, window_bounds = array<i64: 1, 32>}, {pipeline_mode = #tpu.pipeline_mode<synchronous>, transform_indices = @transform_2, window_bounds = array<i64: 1, 32>}, {pipeline_mode = #tpu.pipeline_mode<synchronous>, transform_indices = @transform_3, window_bounds = array<i64: 32, 32>}, {pipeline_mode = #tpu.pipeline_mode<synchronous>, transform_indices = @transform_4, window_bounds = array<i64: 1, 32>}, {pipeline_mode = #tpu.pipeline_mode<synchronous>, transform_indices = @transform_5, window_bounds = array<i64: 32, 8>}, {pipeline_mode = #tpu.pipeline_mode<synchronous>, transform_indices = @transform_6, window_bounds = array<i64: 1, 8>}, {transform_indices = @transform_7, window_bounds = array<i64: 8, 8>}]} {
    %c0 = arith.constant 0 : index
    %c0_0 = arith.constant 0 : index
    %0 = vector.load %arg1[%c0, %c0_0] : memref<8x256xf32, #tpu.memory_space<vmem>>, vector<8x256xf32>
    %cst = arith.constant dense<0.000000e+00> : vector<8xf32>
    %1 = vector.multi_reduction <add>, %0, %cst [1] : vector<8x256xf32> to vector<8xf32>
    %2 = vector.shape_cast %1 : vector<8xf32> to vector<8x1xf32>
    %cst_1 = arith.constant 2.560000e+02 : f32
    %3 = vector.broadcast %cst_1 : f32 to vector<8x1xf32>
    %4 = arith.divf %2, %3 : vector<8x1xf32>
    %c0_2 = arith.constant 0 : index
    %c0_3 = arith.constant 0 : index
    %5 = vector.load %arg2[%c0_2, %c0_3] : memref<1x32xf32, #tpu.memory_space<vmem>>, vector<1x32xf32>
    %6 = vector.broadcast %4 : vector<8x1xf32> to vector<8x32xf32>
    %7 = vector.broadcast %5 : vector<1x32xf32> to vector<8x32xf32>
    %8 = arith.mulf %6, %7 : vector<8x32xf32>
    %c0_4 = arith.constant 0 : index
    %c0_5 = arith.constant 0 : index
    %9 = vector.load %arg3[%c0_4, %c0_5] : memref<1x32xf32, #tpu.memory_space<vmem>>, vector<1x32xf32>
    %10 = vector.broadcast %9 : vector<1x32xf32> to vector<8x32xf32>
    %11 = arith.addf %8, %10 : vector<8x32xf32>
    %cst_6 = arith.constant 0.000000e+00 : f32
    %12 = vector.broadcast %cst_6 : f32 to vector<8x32xf32>
    %13 = arith.cmpf ogt, %11, %12 : vector<8x32xf32>
    %cst_7 = arith.constant 0.00999999977 : f32
    %14 = vector.broadcast %cst_7 : f32 to vector<8x32xf32>
    %15 = arith.mulf %14, %11 : vector<8x32xf32>
    %16 = arith.select %13, %11, %15 : vector<8x32xi1>, vector<8x32xf32>
    %c0_8 = arith.constant 0 : index
    %c0_9 = arith.constant 0 : index
    %17 = vector.load %arg4[%c0_8, %c0_9] : memref<32x32xf32, #tpu.memory_space<vmem>>, vector<32x32xf32>
    %cst_10 = arith.constant dense<0.000000e+00> : vector<8x32xf32>
    %18 = tpu.matmul %16, %17, %cst_10 {dimension_numbers = #tpu.dot_dimension_numbers<[1], [0], [0], [1], [0, 0, 1, 1], [], []>} : vector<8x32xf32>, vector<32x32xf32>, vector<8x32xf32> -> vector<8x32xf32>
    %c0_11 = arith.constant 0 : index
    %c0_12 = arith.constant 0 : index
    %19 = vector.load %arg5[%c0_11, %c0_12] : memref<1x32xf32, #tpu.memory_space<vmem>>, vector<1x32xf32>
    %20 = vector.broadcast %19 : vector<1x32xf32> to vector<8x32xf32>
    %21 = arith.addf %18, %20 : vector<8x32xf32>
    %cst_13 = arith.constant 0.000000e+00 : f32
    %22 = vector.broadcast %cst_13 : f32 to vector<8x32xf32>
    %23 = arith.cmpf ogt, %21, %22 : vector<8x32xf32>
    %cst_14 = arith.constant 0.00999999977 : f32
    %24 = vector.broadcast %cst_14 : f32 to vector<8x32xf32>
    %25 = arith.mulf %24, %21 : vector<8x32xf32>
    %26 = arith.select %23, %21, %25 : vector<8x32xi1>, vector<8x32xf32>
    %c0_15 = arith.constant 0 : index
    %c0_16 = arith.constant 0 : index
    %27 = vector.load %arg6[%c0_15, %c0_16] : memref<32x8xf32, #tpu.memory_space<vmem>>, vector<32x8xf32>
    %cst_17 = arith.constant dense<0.000000e+00> : vector<8x8xf32>
    %28 = tpu.matmul %26, %27, %cst_17 {dimension_numbers = #tpu.dot_dimension_numbers<[1], [0], [0], [1], [0, 0, 1, 1], [], []>} : vector<8x32xf32>, vector<32x8xf32>, vector<8x8xf32> -> vector<8x8xf32>
    %c0_18 = arith.constant 0 : index
    %c0_19 = arith.constant 0 : index
    %29 = vector.load %arg7[%c0_18, %c0_19] : memref<1x8xf32, #tpu.memory_space<vmem>>, vector<1x8xf32>
    %30 = vector.broadcast %29 : vector<1x8xf32> to vector<8x8xf32>
    %31 = arith.addf %28, %30 : vector<8x8xf32>
    %c0_20 = arith.constant 0 : index
    %c0_21 = arith.constant 0 : index
    %32 = vector.load %arg8[%c0_20, %c0_21] : memref<8x8xf32, #tpu.memory_space<vmem>>, vector<8x8xf32>
    tpu.vector_store %arg8[%c0_20, %c0_21], %31 {strides = array<i32>} : memref<8x8xf32, #tpu.memory_space<vmem>>, vector<8x8xf32>,
    return
  }
  func.func @transform_0(%arg0: i32) -> (i32, i32) {
    %c0_i32 = arith.constant 0 : i32
    %c0_i32_0 = arith.constant 0 : i32
    return %arg0, %c0_i32 : i32, i32
  }
  func.func @transform_1(%arg0: i32) -> (i32, i32) {
    %c0_i32 = arith.constant 0 : i32
    %c0_i32_0 = arith.constant 0 : i32
    %c0_i32_1 = arith.constant 0 : i32
    return %c0_i32, %c0_i32_0 : i32, i32
  }
  func.func @transform_2(%arg0: i32) -> (i32, i32) {
    %c0_i32 = arith.constant 0 : i32
    %c0_i32_0 = arith.constant 0 : i32
    %c0_i32_1 = arith.constant 0 : i32
    return %c0_i32, %c0_i32_0 : i32, i32
  }
  func.func @transform_3(%arg0: i32) -> (i32, i32) {
    %c0_i32 = arith.constant 0 : i32
    %c0_i32_0 = arith.constant 0 : i32
    %c0_i32_1 = arith.constant 0 : i32
    return %c0_i32, %c0_i32_0 : i32, i32
  }
  func.func @transform_4(%arg0: i32) -> (i32, i32) {
    %c0_i32 = arith.constant 0 : i32
    %c0_i32_0 = arith.constant 0 : i32
    %c0_i32_1 = arith.constant 0 : i32
    return %c0_i32, %c0_i32_0 : i32, i32
  }
  func.func @transform_5(%arg0: i32) -> (i32, i32) {
    %c0_i32 = arith.constant 0 : i32
    %c0_i32_0 = arith.constant 0 : i32
    %c0_i32_1 = arith.constant 0 : i32
    return %c0_i32, %c0_i32_0 : i32, i32
  }
  func.func @transform_6(%arg0: i32) -> (i32, i32) {
    %c0_i32 = arith.constant 0 : i32
    %c0_i32_0 = arith.constant 0 : i32
    %c0_i32_1 = arith.constant 0 : i32
    return %c0_i32, %c0_i32_0 : i32, i32
  }
  func.func @transform_7(%arg0: i32) -> (i32, i32) {
    %c0_i32 = arith.constant 0 : i32
    %c0_i32_0 = arith.constant 0 : i32
    return %arg0, %c0_i32 : i32, i32
  }
}

</mosaic_0001>

<llo_original>
// kernel: tpu_custom_call.1
$region0: #{tpu_custom_call.1}
  #allocation0 [shape = 'u32[]', space=smem, size = 0x4, offset = 0x4, fixed_abs, tag = 'smem constant byte address 0x4 - core index']
  #allocation1 [shape = 'u32[144,128]{1,0:T(1,128)}', space=vmem, size = 0x12000, scoped, tag = 'internal scratch']
  %s0 = inlined_call_operand.hbm [shape: f32[8,256], index: 0, kind: input, shape index: {}]
  %s1 = inlined_call_operand.vmem [shape: f32[1,32], index: 1, kind: input, shape index: {}]
  %s2 = inlined_call_operand.vmem [shape: f32[1,32], index: 2, kind: input, shape index: {}]
  %s3 = inlined_call_operand.vmem [shape: f32[32,32], index: 3, kind: input, shape index: {}]
  %s4 = inlined_call_operand.vmem [shape: f32[1,32], index: 4, kind: input, shape index: {}]
  %s5 = inlined_call_operand.vmem [shape: f32[32,8], index: 5, kind: input, shape index: {}]
  %s6 = inlined_call_operand.vmem [shape: f32[1,8], index: 6, kind: input, shape index: {}]
  %s7 = inlined_call_operand.hbm [shape: f32[8,8], index: 7, kind: output, shape index: {}]
  %s8 = sld [smem:[#allocation0]]
  $region42: #{tpu_custom_call.1} parent=0
    _
  %s10 = ssub.s32 1, %s8
  %s11 = scalar_select 0, %s10, %s8
  $region1: #{tpu_custom_call.1} parent=0
    #allocation2 [shape = 'u8[8192]{0}', space=vmem, size = 0x2000, scoped, tag = 'input window, operand 0, single buffered']
    #allocation3 [shape = 's32[1]{0}', space=sflag, size = 0x4, scoped, tag = 'scoped memory for tpu_custom_call.1']
    #allocation4 [shape = 's32[1]{0}', space=sflag, size = 0x4, scoped, tag = 'scoped memory for tpu_custom_call.1']
    #allocation5 [shape = 'u8[4096]{0}', space=vmem, size = 0x1000, scoped, tag = 'output window, operand 0, single buffered']
    %12 = vsyncpa [#allocation3], 0
    %13 = vsyncpa [#allocation4], 0
    // Predicated region
    $region2: #{tpu_custom_call.1} parent=1 // pred_check
      _
    $region3: #{tpu_custom_call.1} parent=1 // pred_check_branch
      %15 = sbr.rel (0) target = $region5
    $region4: #{tpu_custom_call.1} parent=1 // pred_region
      %s17 = ssub.s32 256, 256
      %18 = vsyncadd [#allocation3], %s17
      %s20 = sshll.u32 [#allocation2], 4
      %s21 = int_to_ptr.vmem [resolvable:$true] %s20
      %23 = dma.hbm_to_vmem [thread:$0]  %s0, 256, %s21, [#allocation3]
    $region5: #{tpu_custom_call.1} parent=1 // pred_fallthru
      _
    // Predicated region
    $region6: #{tpu_custom_call.1} parent=1 // pred_check
      _
    $region7: #{tpu_custom_call.1} parent=1 // pred_check_branch
      %25 = sbr.rel (0) target = $region9
    $region8: #{tpu_custom_call.1} parent=1 // pred_region
      _
    $region9: #{tpu_custom_call.1} parent=1 // pred_fallthru
      _
    // Predicated region
    $region10: #{tpu_custom_call.1} parent=1 // pred_check
      _
    $region11: #{tpu_custom_call.1} parent=1 // pred_check_branch
      %27 = sbr.rel (0) target = $region13
    $region12: #{tpu_custom_call.1} parent=1 // pred_region
      _
    $region13: #{tpu_custom_call.1} parent=1 // pred_fallthru
      _
    // Predicated region
    $region14: #{tpu_custom_call.1} parent=1 // pred_check
      _
    $region15: #{tpu_custom_call.1} parent=1 // pred_check_branch
      %29 = sbr.rel (0) target = $region17
    $region16: #{tpu_custom_call.1} parent=1 // pred_region
      _
    $region17: #{tpu_custom_call.1} parent=1 // pred_fallthru
      _
    // Predicated region
    $region18: #{tpu_custom_call.1} parent=1 // pred_check
      _
    $region19: #{tpu_custom_call.1} parent=1 // pred_check_branch
      %31 = sbr.rel (0) target = $region21
    $region20: #{tpu_custom_call.1} parent=1 // pred_region
      _
    $region21: #{tpu_custom_call.1} parent=1 // pred_fallthru
      _
    // Predicated region
    $region22: #{tpu_custom_call.1} parent=1 // pred_check
      _
    $region23: #{tpu_custom_call.1} parent=1 // pred_check_branch
      %33 = sbr.rel (0) target = $region25
    $region24: #{tpu_custom_call.1} parent=1 // pred_region
      _
    $region25: #{tpu_custom_call.1} parent=1 // pred_fallthru
      _
    // Predicated region
    $region26: #{tpu_custom_call.1} parent=1 // pred_check
      _
    $region27: #{tpu_custom_call.1} parent=1 // pred_check_branch
      %35 = sbr.rel (0) target = $region29
    $region28: #{tpu_custom_call.1} parent=1 // pred_region
      _
    $region29: #{tpu_custom_call.1} parent=1 // pred_fallthru
      _
    // Predicated region
    $region30: #{tpu_custom_call.1} parent=1 // pred_check
      _
    $region31: #{tpu_custom_call.1} parent=1 // pred_check_branch
      %37 = sbr.rel (0) target = $region33
    $region32: #{tpu_custom_call.1} parent=1 // pred_region
      %38 = dma.done [#allocation3], 256
    $region33: #{tpu_custom_call.1} parent=1 // pred_fallthru
      _
    %v39 = vld [vmem:[#allocation2] sm:$0xff]
    %v40 = vld [vmem:[#allocation2 + $0x8] sm:$0xff]
    %v41 = vadd.f32 %v39, %v40
    %42 = vadd.xlane.f32.xlu0 %v41
    %v43 = vpop.xlane.xlu0 %42
    %v44 = vrcp.pop 256.0
    %v45 = vmul.f32 %v43, %v44
    %v46 = vld [vmem:[%s1] sm:$0x1]
    %v48 = vlaneseq
    %v49 = vshrl.u32 %v48, 7
    %v50 = vsub.s32 0, %v49
    %v51 = vrot.slane %v46, %v50
    %v53 = vmul.f32 %v45, %v51
    %v54 = vld [vmem:[%s2] sm:$0x1]
    %v56 = vlaneseq
    %v57 = vshrl.u32 %v56, 7
    %v58 = vsub.s32 0, %v57
    %v59 = vrot.slane %v54, %v58
    %v61 = vadd.f32 %v53, %v59
    %vm62 = vcmp.gt.f32.partialorder %v61, 0.0
    %v63 = vmul.f32 %v61, 0.01
    %v64 = vsel %vm62, %v61, %v63
    %v65 = vld [vmem:[%s3] sm:$0xff]
    %v66 = vld [vmem:[%s3 + $0x8] sm:$0xff]
    %v67 = vld [vmem:[%s3 + $0x10] sm:$0xff]
    %v68 = vld [vmem:[%s3 + $0x18] sm:$0xff]
    %v69 = vld [vmem:[%s4] sm:$0x1]
    %v71 = vlaneseq
    %v72 = vshrl.u32 %v71, 7
    %v73 = vsub.s32 0, %v72
    %v74 = vrot.slane %v69, %v73
    %vm76 = vcmask 261120
    %v78 = vsel %vm76, %v64, 0
    %80 = vmatprep.subr.mxu0 0.0
    %81 = vmatpush1.msra.mxu0 0.0
    %82 = vmatprep.subr.mxu0 0.0
    %83 = vmatpush1.msra.mxu0 0.0
    %84 = vmatprep.subr.mxu0 0.0
    %85 = vmatpush1.msra.mxu0 0.0
    %86 = vmatprep.subr.mxu0 0.0
    %87 = vmatpush1.msra.mxu0 0.0
    %88 = vmatprep.subr.mxu0 0.0
    %89 = vmatpush1.msra.mxu0 0.0
    %90 = vmatprep.subr.mxu0 0.0
    %91 = vmatpush1.msra.mxu0 0.0
    %92 = vmatprep.subr.mxu0 0.0
    %93 = vmatpush1.msra.mxu0 0.0
    %94 = vmatprep.subr.mxu0 0.0
    %95 = vmatpush1.msra.mxu0 0.0
    %96 = vmatprep.subr.mxu0 0.0
    %97 = vmatpush1.msra.mxu0 0.0
    %98 = vmatprep.subr.mxu0 0.0
    %99 = vmatpush1.msra.mxu0 0.0
    %100 = vmatprep.subr.mxu0 0.0
    %101 = vmatpush1.msra.mxu0 0.0
    %102 = vmatprep.subr.mxu0 0.0
    %103 = vmatpush1.msra.mxu0 0.0
    %104 = vmatprep.subr.mxu0 0.0
    %105 = vmatpush1.msra.mxu0 %v68
    %106 = vmatprep.subr.mxu0 0.0
    %107 = vmatpush1.msra.mxu0 %v67
    %108 = vmatprep.subr.mxu0 0.0
    %109 = vmatpush1.msra.mxu0 %v66
    %110 = vmatprep.subr.mxu0 0.0
    %111 = vmatpush1.msra.mxu0 %v65
    %112 = vmatprep.subr.mxu0 0.0
    %113 = vmatpush2.msra.mxu0 0.0
    %114 = vmatprep.subr.mxu0 0.0
    %115 = vmatpush2.msra.mxu0 0.0
    %116 = vmatprep.subr.mxu0 0.0
    %117 = vmatpush2.msra.mxu0 0.0
    %118 = vmatprep.subr.mxu0 0.0
    %119 = vmatpush2.msra.mxu0 0.0
    %120 = vmatprep.subr.mxu0 0.0
    %121 = vmatpush2.msra.mxu0 0.0
    %122 = vmatprep.subr.mxu0 0.0
    %123 = vmatpush2.msra.mxu0 0.0
    %124 = vmatprep.subr.mxu0 0.0
    %125 = vmatpush2.msra.mxu0 0.0
    %126 = vmatprep.subr.mxu0 0.0
    %127 = vmatpush2.msra.mxu0 0.0
    %128 = vmatprep.subr.mxu0 0.0
    %129 = vmatpush2.msra.mxu0 0.0
    %130 = vmatprep.subr.mxu0 0.0
    %131 = vmatpush2.msra.mxu0 0.0
    %132 = vmatprep.subr.mxu0 0.0
    %133 = vmatpush2.msra.mxu0 0.0
    %134 = vmatprep.subr.mxu0 0.0
    %135 = vmatpush2.msra.mxu0 0.0
    %136 = vmatprep.subr.mxu0 0.0
    %137 = vmatpush2.msra.mxu0 0.0
    %138 = vmatprep.subr.mxu0 0.0
    %139 = vmatpush2.msra.mxu0 0.0
    %140 = vmatprep.subr.mxu0 0.0
    %141 = vmatpush2.msra.mxu0 0.0
    %142 = vmatprep.subr.mxu0 0.0
    %143 = vmatpush2.msra.mxu0 0.0
    %144 = vmatprep.mubr.f32.mxu0 0.0
    %145 = vmatmul.mubr.f32.gmra.mxu0 %v78
    %v146 = vpop.f32.mrf.mxu0
    %v147 = vadd.f32 %v74, %v146
    %v148 = vpop.f32.mrf.mxu0
    %149 = vdwg.mxu0
    %vm150 = vcmp.gt.f32.partialorder %v147, 0.0
    %v151 = vmul.f32 %v147, 0.01
    %v152 = vsel %vm150, %v147, %v151
    %v153 = vld [vmem:[%s5] sm:$0xff]
    %v154 = vld [vmem:[%s5 + $0x8] sm:$0xff]
    %v155 = vld [vmem:[%s5 + $0x10] sm:$0xff]
    %v156 = vld [vmem:[%s5 + $0x18] sm:$0xff]
    %v157 = vld [vmem:[%s6] sm:$0x1]
    %v159 = vlaneseq
    %v160 = vshrl.u32 %v159, 7
    %v161 = vsub.s32 0, %v160
    %v162 = vrot.slane %v157, %v161
    %v165 = vsel %vm76, %v152, 0
    %167 = vmatprep.subr.mxu0 0.0
    %168 = vmatpush1.msra.mxu0 0.0
    %169 = vmatprep.subr.mxu0 0.0
    %170 = vmatpush1.msra.mxu0 0.0
    %171 = vmatprep.subr.mxu0 0.0
    %172 = vmatpush1.msra.mxu0 0.0
    %173 = vmatprep.subr.mxu0 0.0
    %174 = vmatpush1.msra.mxu0 0.0
    %175 = vmatprep.subr.mxu0 0.0
    %176 = vmatpush1.msra.mxu0 0.0
    %177 = vmatprep.subr.mxu0 0.0
    %178 = vmatpush1.msra.mxu0 0.0
    %179 = vmatprep.subr.mxu0 0.0
    %180 = vmatpush1.msra.mxu0 0.0
    %181 = vmatprep.subr.mxu0 0.0
    %182 = vmatpush1.msra.mxu0 0.0
    %183 = vmatprep.subr.mxu0 0.0
    %184 = vmatpush1.msra.mxu0 0.0
    %185 = vmatprep.subr.mxu0 0.0
    %186 = vmatpush1.msra.mxu0 0.0
    %187 = vmatprep.subr.mxu0 0.0
    %188 = vmatpush1.msra.mxu0 0.0
    %189 = vmatprep.subr.mxu0 0.0
    %190 = vmatpush1.msra.mxu0 0.0
    %191 = vmatprep.subr.mxu0 0.0
    %192 = vmatpush1.msra.mxu0 %v156
    %193 = vmatprep.subr.mxu0 0.0
    %194 = vmatpush1.msra.mxu0 %v155
    %195 = vmatprep.subr.mxu0 0.0
    %196 = vmatpush1.msra.mxu0 %v154
    %197 = vmatprep.subr.mxu0 0.0
    %198 = vmatpush1.msra.mxu0 %v153
    %199 = vmatprep.subr.mxu0 0.0
    %200 = vmatpush2.msra.mxu0 0.0
    %201 = vmatprep.subr.mxu0 0.0
    %202 = vmatpush2.msra.mxu0 0.0
    %203 = vmatprep.subr.mxu0 0.0
    %204 = vmatpush2.msra.mxu0 0.0
    %205 = vmatprep.subr.mxu0 0.0
    %206 = vmatpush2.msra.mxu0 0.0
    %207 = vmatprep.subr.mxu0 0.0
    %208 = vmatpush2.msra.mxu0 0.0
    %209 = vmatprep.subr.mxu0 0.0
    %210 = vmatpush2.msra.mxu0 0.0
    %211 = vmatprep.subr.mxu0 0.0
    %212 = vmatpush2.msra.mxu0 0.0
    %213 = vmatprep.subr.mxu0 0.0
    %214 = vmatpush2.msra.mxu0 0.0
    %215 = vmatprep.subr.mxu0 0.0
    %216 = vmatpush2.msra.mxu0 0.0
    %217 = vmatprep.subr.mxu0 0.0
    %218 = vmatpush2.msra.mxu0 0.0
    %219 = vmatprep.subr.mxu0 0.0
    %220 = vmatpush2.msra.mxu0 0.0
    %221 = vmatprep.subr.mxu0 0.0
    %222 = vmatpush2.msra.mxu0 0.0
    %223 = vmatprep.subr.mxu0 0.0
    %224 = vmatpush2.msra.mxu0 0.0
    %225 = vmatprep.subr.mxu0 0.0
    %226 = vmatpush2.msra.mxu0 0.0
    %227 = vmatprep.subr.mxu0 0.0
    %228 = vmatpush2.msra.mxu0 0.0
    %229 = vmatprep.subr.mxu0 0.0
    %230 = vmatpush2.msra.mxu0 0.0
    %231 = vmatprep.mubr.f32.mxu0 0.0
    %232 = vmatmul.mubr.f32.gmra.mxu0 %v165
    %v233 = vpop.f32.mrf.mxu0
    %v234 = vadd.f32 %v162, %v233
    %v235 = vpop.f32.mrf.mxu0
    %236 = vdwg.mxu0
    %vm237 = vcmask 64512
    %238 = vst.msk [vmem:[#allocation5] sm:$0xff] %vm237, %v234
    // Predicated region
    $region34: #{tpu_custom_call.1} parent=1 // pred_check
      _
    $region35: #{tpu_custom_call.1} parent=1 // pred_check_branch
      %240 = sbr.rel (0) target = $region37
    $region36: #{tpu_custom_call.1} parent=1 // pred_region
      %s242 = ssub.s32 128, 128
      %243 = vsyncadd [#allocation4], %s242
      %s245 = sshll.u32 [#allocation5], 4
      %s246 = int_to_ptr.vmem [resolvable:$true] %s245
      %248 = dma.vmem_to_hbm [thread:$0]  %s246, 128, %s7, [#allocation4]
    $region37: #{tpu_custom_call.1} parent=1 // pred_fallthru
      _
    // Predicated region
    $region38: #{tpu_custom_call.1} parent=1 // pred_check
      _
    $region39: #{tpu_custom_call.1} parent=1 // pred_check_branch
      %250 = sbr.rel (0) target = $region41
    $region40: #{tpu_custom_call.1} parent=1 // pred_region
      %251 = dma.done [#allocation4], 128
    $region41: #{tpu_custom_call.1} parent=1 // pred_fallthru
      _
    %252 = vsyncpa [#allocation3], 1
    %253 = vsyncpa [#allocation4], 1

</llo_original>
